<compile_context>
chip_gen: v6e
topology: v6e:2x2x1
jax: 0.10.0
libtpu: 0.0.40
codegen_flags: <defaults>
</compile_context>

<pallas_src>
import functools

import jax
import jax.numpy as jnp
from jax.experimental import pallas as pl
from jax.experimental.pallas import tpu as pltpu


def _round_up(v, m):
    return (v + m - 1) // m * m


def _padded_row_bytes(width, itemsize):
    # VMEM stores blocks in (8, 128) tiles: lanes pad up to a multiple of 128.
    return _round_up(max(int(width), 1), 128) * int(itemsize)


def _agg_kernel(x_ref, trans_ref, ef_ref, hh_ref,
                avg_ref, w1h_ref, w1e_ref, b1_ref, w2_ref, b2_ref,
                out_ref, *, residual: bool):
    f32 = jnp.float32

    # --- coordinate branch --------------------------------------------------
    # Cast + clip in f32 (v5e VPU/EUP have no bf16).  The mean over messages is
    # folded into a constant (M*D, D) averaging matmul on the MXU.
    x = jnp.clip(x_ref[...].astype(f32), -1000.0, 1000.0)
    trans = jnp.clip(trans_ref[...].astype(f32), -1000.0, 1000.0)
    coord = x + jnp.dot(trans, avg_ref[...], preferred_element_type=f32)

    # --- feature branch (node MLP) --------------------------------------------
    hh = hh_ref[...].astype(f32)
    ef = ef_ref[...].astype(f32)
    # cat(hh, sum_m ef) @ W1 == hh @ W1[:F_in] + ef_flat @ tile(W1[F_in:], M)
    z = (jnp.dot(hh, w1h_ref[...], preferred_element_type=f32)
         + jnp.dot(ef, w1e_ref[...], preferred_element_type=f32)
         + b1_ref[...])
    z = z * jax.nn.sigmoid(z)                                # SiLU
    h = jnp.dot(z, w2_ref[...], preferred_element_type=f32) + b2_ref[...]
    if residual:
        h = hh + h

    # Single packed output slab [coord | h]: one store stream / one output DMA
    # per grid step instead of two lane-sparse ones.
    out_ref[...] = jnp.concatenate([coord, h], axis=-1).astype(out_ref.dtype)
    # TODO(synk): PyTorch's assert_no_nans is a host-side assertion with no clean
    # in-kernel equivalent; NaN checking is left to the caller.


def aggregation_layer(x, trans, edge_feature, hh,
                      w1, b1, w2, b2, *, residual=True, tile_n=4096):
    """Pallas wrapper.

    w1: (F_in + H, H)   (already transposed, i.e. y = agg @ w1 + b1)
    w2: (H, F_out)
    """
    N, D = x.shape
    _, M, H = edge_feature.shape
    F_in = hh.shape[1]
    F_out = w2.shape[1]
    if residual and F_out != F_in:
        raise ValueError(
            f"residual=True requires output_nf == input_nf (got {F_out} vs {F_in})")

    f32 = jnp.float32

    # Lane-dense 2-D mailbox views (row-major reshape => no copy), native dtype.
    trans_flat = trans.reshape(N, M * D)
    ef_flat = edge_feature.reshape(N, M * H)

    # --- weights (tiny, f32) --------------------------------------------------
    w1 = jnp.asarray(w1, f32)
    w1_hh = w1[:F_in, :]                            # (F_in, H)
    w1_e = jnp.tile(w1[F_in:, :], (M, 1))           # (M*H, H): folds the sum over M
    b1_2d = jnp.asarray(b1, f32).reshape(1, H)
    w2_p = jnp.asarray(w2, f32)
    b2_2d = jnp.asarray(b2, f32).reshape(1, F_out)
    avg = jnp.tile(jnp.eye(D, dtype=f32), (M, 1)) / float(M)   # (M*D, D)

    # --- tile size / VMEM budget ----------------------------------------------
    per_row = (_padded_row_bytes(D, x.dtype.itemsize)
               + _padded_row_bytes(M * D, trans.dtype.itemsize)
               + _padded_row_bytes(M * H, edge_feature.dtype.itemsize)
               + _padded_row_bytes(F_in, hh.dtype.itemsize)
               + _padded_row_bytes(D + F_out, 4))               # packed f32 output
    vmem_budget = 24 << 20                      # double-buffered tiles, v7x-safe
    max_rows = max(8, (vmem_budget // (2 * per_row)) // 8 * 8)
    half = _round_up(-(-N // 2), 8)             # keep grid >= 2 (v7x has 2 TCs)
    tn = max(8, min(_round_up(int(tile_n), 8), max_rows, half))
    grid = (pl.cdiv(N, tn),)

    weight_vmem = sum(
        _padded_row_bytes(w.shape[-1], 4) * _round_up(w.shape[0], 8)
        for w in (avg, w1_hh, w1_e, b1_2d, w2_p, b2_2d))
    vmem_limit = int(min(max(2 * tn * per_row + 2 * weight_vmem + (4 << 20),
                             16 << 20),
                         48 << 20))

    flops = 2 * N * (M * D * D + F_in * H + M * H * H + H * F_out)
    bytes_accessed = (N * (x.dtype.itemsize * D
                           + trans.dtype.itemsize * M * D
                           + edge_feature.dtype.itemsize * M * H
                           + hh.dtype.itemsize * F_in
                           + 4 * (D + F_out))
                      + 4 * (M * D * D + F_in * H + M * H * H + H
                             + H * F_out + F_out))
    cost = pl.CostEstimate(flops=flops,
                           transcendentals=2 * N * H,       # exp + recip in sigmoid
                           bytes_accessed=bytes_accessed)

    kernel = functools.partial(_agg_kernel, residual=residual)

    out = pl.pallas_call(
        kernel,
        out_shape=jax.ShapeDtypeStruct((N, D + F_out), f32),
        grid_spec=pltpu.PrefetchScalarGridSpec(
            num_scalar_prefetch=0,
            grid=grid,
            in_specs=[
                pl.BlockSpec((tn, D), lambda i: (i, 0)),
                pl.BlockSpec((tn, M * D), lambda i: (i, 0)),
                pl.BlockSpec((tn, M * H), lambda i: (i, 0)),
                pl.BlockSpec((tn, F_in), lambda i: (i, 0)),
                pl.BlockSpec((M * D, D), lambda i: (0, 0)),
                pl.BlockSpec((F_in, H), lambda i: (0, 0)),
                pl.BlockSpec((M * H, H), lambda i: (0, 0)),
                pl.BlockSpec((1, H), lambda i: (0, 0)),
                pl.BlockSpec((H, F_out), lambda i: (0, 0)),
                pl.BlockSpec((1, F_out), lambda i: (0, 0)),
            ],
            out_specs=pl.BlockSpec((tn, D + F_out), lambda i: (i, 0)),
        ),
        compiler_params=pltpu.CompilerParams(
            dimension_semantics=("parallel",),
            vmem_limit_bytes=vmem_limit),
        cost_estimate=cost,
    )(x, trans_flat, ef_flat, hh, avg, w1_hh, w1_e, b1_2d, w2_p, b2_2d)

    # Split the packed slab; under jit with a downstream consumer these slices
    # fuse away (the kernel itself writes only D + F_out lanes per node).
    return out[:, :D], out[:, D:]


def reference(x, trans, edge_feature, hh, w1, b1, w2, b2, residual=True):
    f32 = jnp.float32
    x = jnp.clip(x.astype(f32), -1000.0, 1000.0)
    trans = jnp.clip(trans.astype(f32), -1000.0, 1000.0)
    coord = x + jnp.mean(trans, axis=1)
    e = jnp.sum(edge_feature.astype(f32), axis=1)
    agg = jnp.concatenate([hh.astype(f32), e], axis=1)
    z = agg @ w1.astype(f32) + b1.astype(f32)
    z = z * jax.nn.sigmoid(z)
    h = z @ w2.astype(f32) + b2.astype(f32)
    if residual:
        h = hh.astype(f32) + h
    return coord, h


def _run_case(key, N, M, D, F_in, H, F_out, tile_n,
              mailbox_dtype=jnp.float32,
              coord_tol=(1e-3, 0.5), h_tol=(2e-2, 5e-2)):
    ks = jax.random.split(key, 8)
    x = jax.random.normal(ks[0], (N, D), jnp.float32) * 10.0
    trans = (jax.random.normal(ks[1], (N, M, D), jnp.float32) * 2000.0
             ).astype(mailbox_dtype)                       # exercises clipping
    edge_feature = jax.random.normal(ks[2], (N, M, H), jnp.float32
                                     ).astype(mailbox_dtype)
    hh = jax.random.normal(ks[3], (N, F_in), jnp.float32)

    # Linear weights stored transposed: y = x @ W + b
    w1 = jax.random.normal(ks[4], (F_in + H, H), jnp.float32) / jnp.sqrt(F_in + H)
    b1 = jax.random.normal(ks[5], (H,), jnp.float32) * 0.01
    w2 = jax.random.normal(ks[6], (H, F_out), jnp.float32) / jnp.sqrt(H)
    b2 = jax.random.normal(ks[7], (F_out,), jnp.float32) * 0.01

    coord, h = aggregation_layer(x, trans, edge_feature, hh, w1, b1, w2, b2,
                                 residual=True, tile_n=tile_n)
    jax.block_until_ready((coord, h))

    coord_ref, h_ref = reference(x, trans, edge_feature, hh, w1, b1, w2, b2,
                                 residual=True)
    assert coord.shape == coord_ref.shape and h.shape == h_ref.shape
    assert not jnp.isnan(coord).any() and not jnp.isnan(h).any()
    c_rtol, c_atol = coord_tol
    h_rtol, h_atol = h_tol
    assert jnp.allclose(coord, coord_ref, rtol=c_rtol, atol=c_atol), (
        float(jnp.max(jnp.abs(coord - coord_ref))))
    assert jnp.allclose(h, h_ref, rtol=h_rtol, atol=h_atol), (
        float(jnp.max(jnp.abs(h - h_ref))))


if __name__ == "__main__":
    # Module config: input_nf=16, hidden_nf=32, output_nf=16, residual=True
    key = jax.random.PRNGKey(0)
    k0, k1, k2 = jax.random.split(key, 3)

    # small shapes consistent with the module forward
    _run_case(k0, N=8, M=4, D=3, F_in=16, H=32, F_out=16, tile_n=4096)
    # N not a multiple of 8: exercises the ragged last block (no wrapper pad)
    _run_case(k1, N=13, M=4, D=3, F_in=16, H=32, F_out=16, tile_n=4096)
    # bf16 mailboxes streamed in native dtype + grid split across 2 tiles
    _run_case(k2, N=300, M=4, D=3, F_in=16, H=32, F_out=16, tile_n=4096,
              mailbox_dtype=jnp.bfloat16,
              coord_tol=(2e-2, 2.0), h_tol=(5e-2, 1e-1))

    print("KERNEL_OK")
</pallas_src>

<mosaic_0001>
module attributes {stable_mosaic.version = 11 : i64} {
  func.func @_agg_kernel(%arg0: i32, %arg1: memref<8x3xf32, #tpu.memory_space<vmem>>, %arg2: memref<8x12xf32, #tpu.memory_space<vmem>>, %arg3: memref<8x128xf32, #tpu.memory_space<vmem>>, %arg4: memref<8x16xf32, #tpu.memory_space<vmem>>, %arg5: memref<12x3xf32, #tpu.memory_space<vmem>>, %arg6: memref<16x32xf32, #tpu.memory_space<vmem>>, %arg7: memref<128x32xf32, #tpu.memory_space<vmem>>, %arg8: memref<1x32xf32, #tpu.memory_space<vmem>>, %arg9: memref<32x16xf32, #tpu.memory_space<vmem>>, %arg10: memref<1x16xf32, #tpu.memory_space<vmem>>, %arg11: memref<8x19xf32, #tpu.memory_space<vmem>>) attributes {dimension_semantics = [#tpu.dimension_semantics<parallel>], iteration_bounds = array<i64: 1>, scalar_prefetch = 0 : i64, scratch_operands = 0 : i64, tpu.core_type = #tpu.core_type<tc>, window_params = [{transform_indices = @transform_0, window_bounds = array<i64: 8, 3>}, {transform_indices = @transform_1, window_bounds = array<i64: 8, 12>}, {transform_indices = @transform_2, window_bounds = array<i64: 8, 128>}, {transform_indices = @transform_3, window_bounds = array<i64: 8, 16>}, {pipeline_mode = #tpu.pipeline_mode<synchronous>, transform_indices = @transform_4, window_bounds = array<i64: 12, 3>}, {pipeline_mode = #tpu.pipeline_mode<synchronous>, transform_indices = @transform_5, window_bounds = array<i64: 16, 32>}, {pipeline_mode = #tpu.pipeline_mode<synchronous>, transform_indices = @transform_6, window_bounds = array<i64: 128, 32>}, {pipeline_mode = #tpu.pipeline_mode<synchronous>, transform_indices = @transform_7, window_bounds = array<i64: 1, 32>}, {pipeline_mode = #tpu.pipeline_mode<synchronous>, transform_indices = @transform_8, window_bounds = array<i64: 32, 16>}, {pipeline_mode = #tpu.pipeline_mode<synchronous>, transform_indices = @transform_9, window_bounds = array<i64: 1, 16>}, {transform_indices = @transform_10, window_bounds = array<i64: 8, 19>}]} {
    %c0 = arith.constant 0 : index
    %c0_0 = arith.constant 0 : index
    %0 = vector.load %arg1[%c0, %c0_0] : memref<8x3xf32, #tpu.memory_space<vmem>>, vector<8x3xf32>
    %cst = arith.constant -1.000000e+03 : f32
    %cst_1 = arith.constant 1.000000e+03 : f32
    %1 = vector.broadcast %cst : f32 to vector<8x3xf32>
    %2 = arith.maximumf %1, %0 : vector<8x3xf32>
    %3 = vector.broadcast %cst_1 : f32 to vector<8x3xf32>
    %4 = arith.minimumf %3, %2 : vector<8x3xf32>
    %c0_2 = arith.constant 0 : index
    %c0_3 = arith.constant 0 : index
    %5 = vector.load %arg2[%c0_2, %c0_3] : memref<8x12xf32, #tpu.memory_space<vmem>>, vector<8x12xf32>
    %cst_4 = arith.constant -1.000000e+03 : f32
    %cst_5 = arith.constant 1.000000e+03 : f32
    %6 = vector.broadcast %cst_4 : f32 to vector<8x12xf32>
    %7 = arith.maximumf %6, %5 : vector<8x12xf32>
    %8 = vector.broadcast %cst_5 : f32 to vector<8x12xf32>
    %9 = arith.minimumf %8, %7 : vector<8x12xf32>
    %c0_6 = arith.constant 0 : index
    %c0_7 = arith.constant 0 : index
    %10 = vector.load %arg5[%c0_6, %c0_7] : memref<12x3xf32, #tpu.memory_space<vmem>>, vector<12x3xf32>
    %cst_8 = arith.constant dense<0.000000e+00> : vector<8x3xf32>
    %11 = tpu.matmul %9, %10, %cst_8 {dimension_numbers = #tpu.dot_dimension_numbers<[1], [0], [0], [1], [0, 0, 1, 1], [], []>} : vector<8x12xf32>, vector<12x3xf32>, vector<8x3xf32> -> vector<8x3xf32>
    %12 = arith.addf %4, %11 : vector<8x3xf32>
    %c0_9 = arith.constant 0 : index
    %c0_10 = arith.constant 0 : index
    %13 = vector.load %arg4[%c0_9, %c0_10] : memref<8x16xf32, #tpu.memory_space<vmem>>, vector<8x16xf32>
    %c0_11 = arith.constant 0 : index
    %c0_12 = arith.constant 0 : index
    %14 = vector.load %arg3[%c0_11, %c0_12] : memref<8x128xf32, #tpu.memory_space<vmem>>, vector<8x128xf32>
    %c0_13 = arith.constant 0 : index
    %c0_14 = arith.constant 0 : index
    %15 = vector.load %arg6[%c0_13, %c0_14] : memref<16x32xf32, #tpu.memory_space<vmem>>, vector<16x32xf32>
    %cst_15 = arith.constant dense<0.000000e+00> : vector<8x32xf32>
    %16 = tpu.matmul %13, %15, %cst_15 {dimension_numbers = #tpu.dot_dimension_numbers<[1], [0], [0], [1], [0, 0, 1, 1], [], []>} : vector<8x16xf32>, vector<16x32xf32>, vector<8x32xf32> -> vector<8x32xf32>
    %c0_16 = arith.constant 0 : index
    %c0_17 = arith.constant 0 : index
    %17 = vector.load %arg7[%c0_16, %c0_17] : memref<128x32xf32, #tpu.memory_space<vmem>>, vector<128x32xf32>
    %cst_18 = arith.constant dense<0.000000e+00> : vector<8x32xf32>
    %18 = tpu.matmul %14, %17, %cst_18 {dimension_numbers = #tpu.dot_dimension_numbers<[1], [0], [0], [1], [0, 0, 1, 1], [], []>} : vector<8x128xf32>, vector<128x32xf32>, vector<8x32xf32> -> vector<8x32xf32>
    %19 = arith.addf %16, %18 : vector<8x32xf32>
    %c0_19 = arith.constant 0 : index
    %c0_20 = arith.constant 0 : index
    %20 = vector.load %arg8[%c0_19, %c0_20] : memref<1x32xf32, #tpu.memory_space<vmem>>, vector<1x32xf32>
    %21 = vector.broadcast %20 : vector<1x32xf32> to vector<8x32xf32>
    %22 = arith.addf %19, %21 : vector<8x32xf32>
    %23 = arith.negf %22 : vector<8x32xf32>
    %24 = math.exp %23 : vector<8x32xf32>
    %cst_21 = arith.constant 1.000000e+00 : f32
    %25 = vector.broadcast %cst_21 : f32 to vector<8x32xf32>
    %26 = arith.addf %25, %24 : vector<8x32xf32>
    %27 = arith.divf %25, %26 : vector<8x32xf32>
    %28 = arith.mulf %22, %27 : vector<8x32xf32>
    %c0_22 = arith.constant 0 : index
    %c0_23 = arith.constant 0 : index
    %29 = vector.load %arg9[%c0_22, %c0_23] : memref<32x16xf32, #tpu.memory_space<vmem>>, vector<32x16xf32>
    %cst_24 = arith.constant dense<0.000000e+00> : vector<8x16xf32>
    %30 = tpu.matmul %28, %29, %cst_24 {dimension_numbers = #tpu.dot_dimension_numbers<[1], [0], [0], [1], [0, 0, 1, 1], [], []>} : vector<8x32xf32>, vector<32x16xf32>, vector<8x16xf32> -> vector<8x16xf32>
    %c0_25 = arith.constant 0 : index
    %c0_26 = arith.constant 0 : index
    %31 = vector.load %arg10[%c0_25, %c0_26] : memref<1x16xf32, #tpu.memory_space<vmem>>, vector<1x16xf32>
    %32 = vector.broadcast %31 : vector<1x16xf32> to vector<8x16xf32>
    %33 = arith.addf %30, %32 : vector<8x16xf32>
    %34 = arith.addf %13, %33 : vector<8x16xf32>
    %35 = tpu.concatenate %12, %34 in 1 : vector<8x3xf32>, vector<8x16xf32> -> vector<8x19xf32>
    %c0_27 = arith.constant 0 : index
    %c0_28 = arith.constant 0 : index
    %36 = vector.load %arg11[%c0_27, %c0_28] : memref<8x19xf32, #tpu.memory_space<vmem>>, vector<8x19xf32>
    tpu.vector_store %arg11[%c0_27, %c0_28], %35 {strides = array<i32>} : memref<8x19xf32, #tpu.memory_space<vmem>>, vector<8x19xf32>,
    return
  }
  func.func @transform_0(%arg0: i32) -> (i32, i32) {
    %c0_i32 = arith.constant 0 : i32
    %c0_i32_0 = arith.constant 0 : i32
    return %arg0, %c0_i32 : i32, i32
  }
  func.func @transform_1(%arg0: i32) -> (i32, i32) {
    %c0_i32 = arith.constant 0 : i32
    %c0_i32_0 = arith.constant 0 : i32
    return %arg0, %c0_i32 : i32, i32
  }
  func.func @transform_2(%arg0: i32) -> (i32, i32) {
    %c0_i32 = arith.constant 0 : i32
    %c0_i32_0 = arith.constant 0 : i32
    return %arg0, %c0_i32 : i32, i32
  }
  func.func @transform_3(%arg0: i32) -> (i32, i32) {
    %c0_i32 = arith.constant 0 : i32
    %c0_i32_0 = arith.constant 0 : i32
    return %arg0, %c0_i32 : i32, i32
  }
  func.func @transform_4(%arg0: i32) -> (i32, i32) {
    %c0_i32 = arith.constant 0 : i32
    %c0_i32_0 = arith.constant 0 : i32
    %c0_i32_1 = arith.constant 0 : i32
    return %c0_i32, %c0_i32_0 : i32, i32
  }
  func.func @transform_5(%arg0: i32) -> (i32, i32) {
    %c0_i32 = arith.constant 0 : i32
    %c0_i32_0 = arith.constant 0 : i32
    %c0_i32_1 = arith.constant 0 : i32
    return %c0_i32, %c0_i32_0 : i32, i32
  }
  func.func @transform_6(%arg0: i32) -> (i32, i32) {
    %c0_i32 = arith.constant 0 : i32
    %c0_i32_0 = arith.constant 0 : i32
    %c0_i32_1 = arith.constant 0 : i32
    return %c0_i32, %c0_i32_0 : i32, i32
  }
  func.func @transform_7(%arg0: i32) -> (i32, i32) {
    %c0_i32 = arith.constant 0 : i32
    %c0_i32_0 = arith.constant 0 : i32
    %c0_i32_1 = arith.constant 0 : i32
    return %c0_i32, %c0_i32_0 : i32, i32
  }
  func.func @transform_8(%arg0: i32) -> (i32, i32) {
    %c0_i32 = arith.constant 0 : i32
    %c0_i32_0 = arith.constant 0 : i32
    %c0_i32_1 = arith.constant 0 : i32
    return %c0_i32, %c0_i32_0 : i32, i32
  }
  func.func @transform_9(%arg0: i32) -> (i32, i32) {
    %c0_i32 = arith.constant 0 : i32
    %c0_i32_0 = arith.constant 0 : i32
    %c0_i32_1 = arith.constant 0 : i32
    return %c0_i32, %c0_i32_0 : i32, i32
  }
  func.func @transform_10(%arg0: i32) -> (i32, i32) {
    %c0_i32 = arith.constant 0 : i32
    %c0_i32_0 = arith.constant 0 : i32
    return %arg0, %c0_i32 : i32, i32
  }
}

</mosaic_0001>

<llo_original>
// kernel: tpu_custom_call.1
$region0: #{tpu_custom_call.1}
  #allocation0 [shape = 'u32[]', space=smem, size = 0x4, offset = 0x4, fixed_abs, tag = 'smem constant byte address 0x4 - core index']
  #allocation1 [shape = 'u32[144,128]{1,0:T(1,128)}', space=vmem, size = 0x12000, scoped, tag = 'internal scratch']
  %s0 = inlined_call_operand.vmem [shape: f32[8,3], index: 0, kind: input, shape index: {}]
  %s1 = inlined_call_operand.vmem [shape: f32[8,12], index: 1, kind: input, shape index: {}]
  %s2 = inlined_call_operand.vmem [shape: f32[8,128], index: 2, kind: input, shape index: {}]
  %s3 = inlined_call_operand.vmem [shape: f32[8,16], index: 3, kind: input, shape index: {}]
  %s4 = inlined_call_operand.vmem [shape: f32[12,3], index: 4, kind: input, shape index: {}]
  %s5 = inlined_call_operand.vmem [shape: f32[16,32], index: 5, kind: input, shape index: {}]
  %s6 = inlined_call_operand.vmem [shape: f32[128,32], index: 6, kind: input, shape index: {}]
  %s7 = inlined_call_operand.vmem [shape: f32[1,32], index: 7, kind: input, shape index: {}]
  %s8 = inlined_call_operand.vmem [shape: f32[32,16], index: 8, kind: input, shape index: {}]
  %s9 = inlined_call_operand.vmem [shape: f32[1,16], index: 9, kind: input, shape index: {}]
  %s10 = inlined_call_operand.hbm [shape: f32[8,19], index: 10, kind: output, shape index: {}]
  %s11 = sld [smem:[#allocation0]]
  $region50: #{tpu_custom_call.1} parent=0
    _
  %s13 = ssub.s32 1, %s11
  %s14 = scalar_select 0, %s13, %s11
  $region1: #{tpu_custom_call.1} parent=0
    #allocation2 [shape = 'u8[4096]{0}', space=vmem, size = 0x1000, scoped, tag = 'output window, operand 0, single buffered']
    #allocation3 [shape = 's32[1]{0}', space=sflag, size = 0x4, scoped, tag = 'scoped memory for tpu_custom_call.1']
    %15 = vsyncpa [#allocation3], 0
    // Predicated region
    $region2: #{tpu_custom_call.1} parent=1 // pred_check
      _
    $region3: #{tpu_custom_call.1} parent=1 // pred_check_branch
      %17 = sbr.rel (0) target = $region5
    $region4: #{tpu_custom_call.1} parent=1 // pred_region
      _
    $region5: #{tpu_custom_call.1} parent=1 // pred_fallthru
      _
    // Predicated region
    $region6: #{tpu_custom_call.1} parent=1 // pred_check
      _
    $region7: #{tpu_custom_call.1} parent=1 // pred_check_branch
      %19 = sbr.rel (0) target = $region9
    $region8: #{tpu_custom_call.1} parent=1 // pred_region
      _
    $region9: #{tpu_custom_call.1} parent=1 // pred_fallthru
      _
    // Predicated region
    $region10: #{tpu_custom_call.1} parent=1 // pred_check
      _
    $region11: #{tpu_custom_call.1} parent=1 // pred_check_branch
      %21 = sbr.rel (0) target = $region13
    $region12: #{tpu_custom_call.1} parent=1 // pred_region
      _
    $region13: #{tpu_custom_call.1} parent=1 // pred_fallthru
      _
    // Predicated region
    $region14: #{tpu_custom_call.1} parent=1 // pred_check
      _
    $region15: #{tpu_custom_call.1} parent=1 // pred_check_branch
      %23 = sbr.rel (0) target = $region17
    $region16: #{tpu_custom_call.1} parent=1 // pred_region
      _
    $region17: #{tpu_custom_call.1} parent=1 // pred_fallthru
      _
    // Predicated region
    $region18: #{tpu_custom_call.1} parent=1 // pred_check
      _
    $region19: #{tpu_custom_call.1} parent=1 // pred_check_branch
      %25 = sbr.rel (0) target = $region21
    $region20: #{tpu_custom_call.1} parent=1 // pred_region
      _
    $region21: #{tpu_custom_call.1} parent=1 // pred_fallthru
      _
    // Predicated region
    $region22: #{tpu_custom_call.1} parent=1 // pred_check
      _
    $region23: #{tpu_custom_call.1} parent=1 // pred_check_branch
      %27 = sbr.rel (0) target = $region25
    $region24: #{tpu_custom_call.1} parent=1 // pred_region
      _
    $region25: #{tpu_custom_call.1} parent=1 // pred_fallthru
      _
    // Predicated region
    $region26: #{tpu_custom_call.1} parent=1 // pred_check
      _
    $region27: #{tpu_custom_call.1} parent=1 // pred_check_branch
      %29 = sbr.rel (0) target = $region29
    $region28: #{tpu_custom_call.1} parent=1 // pred_region
      _
    $region29: #{tpu_custom_call.1} parent=1 // pred_fallthru
      _
    // Predicated region
    $region30: #{tpu_custom_call.1} parent=1 // pred_check
      _
    $region31: #{tpu_custom_call.1} parent=1 // pred_check_branch
      %31 = sbr.rel (0) target = $region33
    $region32: #{tpu_custom_call.1} parent=1 // pred_region
      _
    $region33: #{tpu_custom_call.1} parent=1 // pred_fallthru
      _
    // Predicated region
    $region34: #{tpu_custom_call.1} parent=1 // pred_check
      _
    $region35: #{tpu_custom_call.1} parent=1 // pred_check_branch
      %33 = sbr.rel (0) target = $region37
    $region36: #{tpu_custom_call.1} parent=1 // pred_region
      _
    $region37: #{tpu_custom_call.1} parent=1 // pred_fallthru
      _
    // Predicated region
    $region38: #{tpu_custom_call.1} parent=1 // pred_check
      _
    $region39: #{tpu_custom_call.1} parent=1 // pred_check_branch
      %35 = sbr.rel (0) target = $region41
    $region40: #{tpu_custom_call.1} parent=1 // pred_region
      _
    $region41: #{tpu_custom_call.1} parent=1 // pred_fallthru
      _
    %v36 = vld [vmem:[%s0] sm:$0xff]
    %v37 = vmax.f32 %v36, -1000.0
    %v38 = vmin.f32 %v37, 1000.0
    %v39 = vld [vmem:[%s1] sm:$0xff]
    %v40 = vmax.f32 %v39, -1000.0
    %v41 = vmin.f32 %v40, 1000.0
    %v42 = vld [vmem:[%s4] sm:$0xff]
    %v43 = vld [vmem:[%s4 + $0x8] sm:$0xf]
    %vm44 = vcmask 97280
    %v46 = vsel %vm44, %v41, 0
    %vm48 = vcmask 1043456
    %v50 = vsel %vm48, %v43, 0
    %52 = vmatprep.subr.mxu0 0.0
    %53 = vmatpush1.msra.mxu0 0.0
    %54 = vmatprep.subr.mxu0 0.0
    %55 = vmatpush1.msra.mxu0 0.0
    %56 = vmatprep.subr.mxu0 0.0
    %57 = vmatpush1.msra.mxu0 0.0
    %58 = vmatprep.subr.mxu0 0.0
    %59 = vmatpush1.msra.mxu0 0.0
    %60 = vmatprep.subr.mxu0 0.0
    %61 = vmatpush1.msra.mxu0 0.0
    %62 = vmatprep.subr.mxu0 0.0
    %63 = vmatpush1.msra.mxu0 0.0
    %64 = vmatprep.subr.mxu0 0.0
    %65 = vmatpush1.msra.mxu0 0.0
    %66 = vmatprep.subr.mxu0 0.0
    %67 = vmatpush1.msra.mxu0 0.0
    %68 = vmatprep.subr.mxu0 0.0
    %69 = vmatpush1.msra.mxu0 0.0
    %70 = vmatprep.subr.mxu0 0.0
    %71 = vmatpush1.msra.mxu0 0.0
    %72 = vmatprep.subr.mxu0 0.0
    %73 = vmatpush1.msra.mxu0 0.0
    %74 = vmatprep.subr.mxu0 0.0
    %75 = vmatpush1.msra.mxu0 0.0
    %76 = vmatprep.subr.mxu0 0.0
    %77 = vmatpush1.msra.mxu0 0.0
    %78 = vmatprep.subr.mxu0 0.0
    %79 = vmatpush1.msra.mxu0 0.0
    %80 = vmatprep.subr.mxu0 0.0
    %81 = vmatpush1.msra.mxu0 %v50
    %82 = vmatprep.subr.mxu0 0.0
    %83 = vmatpush1.msra.mxu0 %v42
    %84 = vmatprep.subr.mxu0 0.0
    %85 = vmatpush2.msra.mxu0 0.0
    %86 = vmatprep.subr.mxu0 0.0
    %87 = vmatpush2.msra.mxu0 0.0
    %88 = vmatprep.subr.mxu0 0.0
    %89 = vmatpush2.msra.mxu0 0.0
    %90 = vmatprep.subr.mxu0 0.0
    %91 = vmatpush2.msra.mxu0 0.0
    %92 = vmatprep.subr.mxu0 0.0
    %93 = vmatpush2.msra.mxu0 0.0
    %94 = vmatprep.subr.mxu0 0.0
    %95 = vmatpush2.msra.mxu0 0.0
    %96 = vmatprep.subr.mxu0 0.0
    %97 = vmatpush2.msra.mxu0 0.0
    %98 = vmatprep.subr.mxu0 0.0
    %99 = vmatpush2.msra.mxu0 0.0
    %100 = vmatprep.subr.mxu0 0.0
    %101 = vmatpush2.msra.mxu0 0.0
    %102 = vmatprep.subr.mxu0 0.0
    %103 = vmatpush2.msra.mxu0 0.0
    %104 = vmatprep.subr.mxu0 0.0
    %105 = vmatpush2.msra.mxu0 0.0
    %106 = vmatprep.subr.mxu0 0.0
    %107 = vmatpush2.msra.mxu0 0.0
    %108 = vmatprep.subr.mxu0 0.0
    %109 = vmatpush2.msra.mxu0 0.0
    %110 = vmatprep.subr.mxu0 0.0
    %111 = vmatpush2.msra.mxu0 0.0
    %112 = vmatprep.subr.mxu0 0.0
    %113 = vmatpush2.msra.mxu0 0.0
    %114 = vmatprep.subr.mxu0 0.0
    %115 = vmatpush2.msra.mxu0 0.0
    %116 = vmatprep.mubr.f32.mxu0 0.0
    %117 = vmatmul.mubr.f32.gmra.mxu0 %v46
    %v118 = vpop.f32.mrf.mxu0
    %v119 = vadd.f32 0.0, %v118
    %v120 = vpop.f32.mrf.mxu0
    %121 = vdwg.mxu0
    %v122 = vadd.f32 %v38, %v119
    %v123 = vld [vmem:[%s3] sm:$0xff]
    %v124 = vld [vmem:[%s2] sm:$0xff]
    %v125 = vld [vmem:[%s5] sm:$0xff]
    %v126 = vld [vmem:[%s5 + $0x8] sm:$0xff]
    %v127 = vld [vmem:[%s6] sm:$0xff]
    %v128 = vld [vmem:[%s6 + $0x8] sm:$0xff]
    %v129 = vld [vmem:[%s6 + $0x10] sm:$0xff]
    %v130 = vld [vmem:[%s6 + $0x18] sm:$0xff]
    %v131 = vld [vmem:[%s6 + $0x20] sm:$0xff]
    %v132 = vld [vmem:[%s6 + $0x28] sm:$0xff]
    %v133 = vld [vmem:[%s6 + $0x30] sm:$0xff]
    %v134 = vld [vmem:[%s6 + $0x38] sm:$0xff]
    %v135 = vld [vmem:[%s6 + $0x40] sm:$0xff]
    %v136 = vld [vmem:[%s6 + $0x48] sm:$0xff]
    %v137 = vld [vmem:[%s6 + $0x50] sm:$0xff]
    %v138 = vld [vmem:[%s6 + $0x58] sm:$0xff]
    %v139 = vld [vmem:[%s6 + $0x60] sm:$0xff]
    %v140 = vld [vmem:[%s6 + $0x68] sm:$0xff]
    %v141 = vld [vmem:[%s6 + $0x70] sm:$0xff]
    %v142 = vld [vmem:[%s6 + $0x78] sm:$0xff]
    %143 = vmatprep.subr.mxu0 0.0
    %144 = vmatpush1.msra.mxu0 %v142
    %145 = vmatprep.subr.mxu0 0.0
    %146 = vmatpush1.msra.mxu0 %v141
    %147 = vmatprep.subr.mxu0 0.0
    %148 = vmatpush1.msra.mxu0 %v140
    %149 = vmatprep.subr.mxu0 0.0
    %150 = vmatpush1.msra.mxu0 %v139
    %151 = vmatprep.subr.mxu0 0.0
    %152 = vmatpush1.msra.mxu0 %v138
    %153 = vmatprep.subr.mxu0 0.0
    %154 = vmatpush1.msra.mxu0 %v137
    %155 = vmatprep.subr.mxu0 0.0
    %156 = vmatpush1.msra.mxu0 %v136
    %157 = vmatprep.subr.mxu0 0.0
    %158 = vmatpush1.msra.mxu0 %v135
    %159 = vmatprep.subr.mxu0 0.0
    %160 = vmatpush1.msra.mxu0 %v134
    %161 = vmatprep.subr.mxu0 0.0
    %162 = vmatpush1.msra.mxu0 %v133
    %163 = vmatprep.subr.mxu0 0.0
    %164 = vmatpush1.msra.mxu0 %v132
    %165 = vmatprep.subr.mxu0 0.0
    %166 = vmatpush1.msra.mxu0 %v131
    %167 = vmatprep.subr.mxu0 0.0
    %168 = vmatpush1.msra.mxu0 %v130
    %169 = vmatprep.subr.mxu0 0.0
    %170 = vmatpush1.msra.mxu0 %v129
    %171 = vmatprep.subr.mxu0 0.0
    %172 = vmatpush1.msra.mxu0 %v128
    %173 = vmatprep.subr.mxu0 0.0
    %174 = vmatpush1.msra.mxu0 %v127
    %175 = vmatprep.subr.mxu0 0.0
    %176 = vmatpush2.msra.mxu0 0.0
    %177 = vmatprep.subr.mxu0 0.0
    %178 = vmatpush2.msra.mxu0 0.0
    %179 = vmatprep.subr.mxu0 0.0
    %180 = vmatpush2.msra.mxu0 0.0
    %181 = vmatprep.subr.mxu0 0.0
    %182 = vmatpush2.msra.mxu0 0.0
    %183 = vmatprep.subr.mxu0 0.0
    %184 = vmatpush2.msra.mxu0 0.0
    %185 = vmatprep.subr.mxu0 0.0
    %186 = vmatpush2.msra.mxu0 0.0
    %187 = vmatprep.subr.mxu0 0.0
    %188 = vmatpush2.msra.mxu0 0.0
    %189 = vmatprep.subr.mxu0 0.0
    %190 = vmatpush2.msra.mxu0 0.0
    %191 = vmatprep.subr.mxu0 0.0
    %192 = vmatpush2.msra.mxu0 0.0
    %193 = vmatprep.subr.mxu0 0.0
    %194 = vmatpush2.msra.mxu0 0.0
    %195 = vmatprep.subr.mxu0 0.0
    %196 = vmatpush2.msra.mxu0 0.0
    %197 = vmatprep.subr.mxu0 0.0
    %198 = vmatpush2.msra.mxu0 0.0
    %199 = vmatprep.subr.mxu0 0.0
    %200 = vmatpush2.msra.mxu0 0.0
    %201 = vmatprep.subr.mxu0 0.0
    %202 = vmatpush2.msra.mxu0 0.0
    %203 = vmatprep.subr.mxu0 0.0
    %204 = vmatpush2.msra.mxu0 0.0
    %205 = vmatprep.subr.mxu0 0.0
    %206 = vmatpush2.msra.mxu0 0.0
    %207 = vmatprep.mubr.f32.mxu0 0.0
    %208 = vmatmul.mubr.f32.gmra.mxu0 %v124
    %v209 = vpop.f32.mrf.mxu0
    %v210 = vadd.f32 0.0, %v209
    %v211 = vpop.f32.mrf.mxu0
    %212 = vdwg.mxu0
    %vm213 = vcmask 130048
    %v215 = vsel %vm213, %v123, 0
    %217 = vmatprep.subr.mxu0 0.0
    %218 = vmatpush1.msra.mxu0 0.0
    %219 = vmatprep.subr.mxu0 0.0
    %220 = vmatpush1.msra.mxu0 0.0
    %221 = vmatprep.subr.mxu0 0.0
    %222 = vmatpush1.msra.mxu0 0.0
    %223 = vmatprep.subr.mxu0 0.0
    %224 = vmatpush1.msra.mxu0 0.0
    %225 = vmatprep.subr.mxu0 0.0
    %226 = vmatpush1.msra.mxu0 0.0
    %227 = vmatprep.subr.mxu0 0.0
    %228 = vmatpush1.msra.mxu0 0.0
    %229 = vmatprep.subr.mxu0 0.0
    %230 = vmatpush1.msra.mxu0 0.0
    %231 = vmatprep.subr.mxu0 0.0
    %232 = vmatpush1.msra.mxu0 0.0
    %233 = vmatprep.subr.mxu0 0.0
    %234 = vmatpush1.msra.mxu0 0.0
    %235 = vmatprep.subr.mxu0 0.0
    %236 = vmatpush1.msra.mxu0 0.0
    %237 = vmatprep.subr.mxu0 0.0
    %238 = vmatpush1.msra.mxu0 0.0
    %239 = vmatprep.subr.mxu0 0.0
    %240 = vmatpush1.msra.mxu0 0.0
    %241 = vmatprep.subr.mxu0 0.0
    %242 = vmatpush1.msra.mxu0 0.0
    %243 = vmatprep.subr.mxu0 0.0
    %244 = vmatpush1.msra.mxu0 0.0
    %245 = vmatprep.subr.mxu0 0.0
    %246 = vmatpush1.msra.mxu0 %v126
    %247 = vmatprep.subr.mxu0 0.0
    %248 = vmatpush1.msra.mxu0 %v125
    %249 = vmatprep.subr.mxu0 0.0
    %250 = vmatpush2.msra.mxu0 0.0
    %251 = vmatprep.subr.mxu0 0.0
    %252 = vmatpush2.msra.mxu0 0.0
    %253 = vmatprep.subr.mxu0 0.0
    %254 = vmatpush2.msra.mxu0 0.0
    %255 = vmatprep.subr.mxu0 0.0
    %256 = vmatpush2.msra.mxu0 0.0
    %257 = vmatprep.subr.mxu0 0.0
    %258 = vmatpush2.msra.mxu0 0.0
    %259 = vmatprep.subr.mxu0 0.0
    %260 = vmatpush2.msra.mxu0 0.0
    %261 = vmatprep.subr.mxu0 0.0
    %262 = vmatpush2.msra.mxu0 0.0
    %263 = vmatprep.subr.mxu0 0.0
    %264 = vmatpush2.msra.mxu0 0.0
    %265 = vmatprep.subr.mxu0 0.0
    %266 = vmatpush2.msra.mxu0 0.0
    %267 = vmatprep.subr.mxu0 0.0
    %268 = vmatpush2.msra.mxu0 0.0
    %269 = vmatprep.subr.mxu0 0.0
    %270 = vmatpush2.msra.mxu0 0.0
    %271 = vmatprep.subr.mxu0 0.0
    %272 = vmatpush2.msra.mxu0 0.0
    %273 = vmatprep.subr.mxu0 0.0
    %274 = vmatpush2.msra.mxu0 0.0
    %275 = vmatprep.subr.mxu0 0.0
    %276 = vmatpush2.msra.mxu0 0.0
    %277 = vmatprep.subr.mxu0 0.0
    %278 = vmatpush2.msra.mxu0 0.0
    %279 = vmatprep.subr.mxu0 0.0
    %280 = vmatpush2.msra.mxu0 0.0
    %281 = vmatprep.mubr.f32.mxu0 0.0
    %282 = vmatmul.mubr.f32.gmra.mxu0 %v215
    %v283 = vpop.f32.mrf.mxu0
    %v284 = vadd.f32 %v210, %v283
    %v285 = vpop.f32.mrf.mxu0
    %286 = vdwg.mxu0
    %v287 = vld [vmem:[%s7] sm:$0x1]
    %v289 = vlaneseq
    %v290 = vshrl.u32 %v289, 7
    %v291 = vsub.s32 0, %v290
    %v292 = vrot.slane %v287, %v291
    %v294 = vadd.f32 %v284, %v292
    %v295 = vxor.u32 %v294, 2147483648
    %v296 = vmul.f32 %v295, 1.442695
    %v297 = vpow.pop %v296
    %v298 = vadd.f32 %v297, 1.0
    %v299 = vrcp.pop %v298
    %v300 = vmul.f32 1.0, %v299
    %v301 = vmul.f32 %v294, %v300
    %v302 = vld [vmem:[%s8] sm:$0xff]
    %v303 = vld [vmem:[%s8 + $0x8] sm:$0xff]
    %v304 = vld [vmem:[%s8 + $0x10] sm:$0xff]
    %v305 = vld [vmem:[%s8 + $0x18] sm:$0xff]
    %v306 = vld [vmem:[%s9] sm:$0x1]
    %v308 = vlaneseq
    %v309 = vshrl.u32 %v308, 7
    %v310 = vsub.s32 0, %v309
    %v311 = vrot.slane %v306, %v310
    %vm313 = vcmask 261120
    %v315 = vsel %vm313, %v301, 0
    %317 = vmatprep.subr.mxu0 0.0
    %318 = vmatpush1.msra.mxu0 0.0
    %319 = vmatprep.subr.mxu0 0.0
    %320 = vmatpush1.msra.mxu0 0.0
    %321 = vmatprep.subr.mxu0 0.0
    %322 = vmatpush1.msra.mxu0 0.0
    %323 = vmatprep.subr.mxu0 0.0
    %324 = vmatpush1.msra.mxu0 0.0
    %325 = vmatprep.subr.mxu0 0.0
    %326 = vmatpush1.msra.mxu0 0.0
    %327 = vmatprep.subr.mxu0 0.0
    %328 = vmatpush1.msra.mxu0 0.0
    %329 = vmatprep.subr.mxu0 0.0
    %330 = vmatpush1.msra.mxu0 0.0
    %331 = vmatprep.subr.mxu0 0.0
    %332 = vmatpush1.msra.mxu0 0.0
    %333 = vmatprep.subr.mxu0 0.0
    %334 = vmatpush1.msra.mxu0 0.0
    %335 = vmatprep.subr.mxu0 0.0
    %336 = vmatpush1.msra.mxu0 0.0
    %337 = vmatprep.subr.mxu0 0.0
    %338 = vmatpush1.msra.mxu0 0.0
    %339 = vmatprep.subr.mxu0 0.0
    %340 = vmatpush1.msra.mxu0 0.0
    %341 = vmatprep.subr.mxu0 0.0
    %342 = vmatpush1.msra.mxu0 %v305
    %343 = vmatprep.subr.mxu0 0.0
    %344 = vmatpush1.msra.mxu0 %v304
    %345 = vmatprep.subr.mxu0 0.0
    %346 = vmatpush1.msra.mxu0 %v303
    %347 = vmatprep.subr.mxu0 0.0
    %348 = vmatpush1.msra.mxu0 %v302
    %349 = vmatprep.subr.mxu0 0.0
    %350 = vmatpush2.msra.mxu0 0.0
    %351 = vmatprep.subr.mxu0 0.0
    %352 = vmatpush2.msra.mxu0 0.0
    %353 = vmatprep.subr.mxu0 0.0
    %354 = vmatpush2.msra.mxu0 0.0
    %355 = vmatprep.subr.mxu0 0.0
    %356 = vmatpush2.msra.mxu0 0.0
    %357 = vmatprep.subr.mxu0 0.0
    %358 = vmatpush2.msra.mxu0 0.0
    %359 = vmatprep.subr.mxu0 0.0
    %360 = vmatpush2.msra.mxu0 0.0
    %361 = vmatprep.subr.mxu0 0.0
    %362 = vmatpush2.msra.mxu0 0.0
    %363 = vmatprep.subr.mxu0 0.0
    %364 = vmatpush2.msra.mxu0 0.0
    %365 = vmatprep.subr.mxu0 0.0
    %366 = vmatpush2.msra.mxu0 0.0
    %367 = vmatprep.subr.mxu0 0.0
    %368 = vmatpush2.msra.mxu0 0.0
    %369 = vmatprep.subr.mxu0 0.0
    %370 = vmatpush2.msra.mxu0 0.0
    %371 = vmatprep.subr.mxu0 0.0
    %372 = vmatpush2.msra.mxu0 0.0
    %373 = vmatprep.subr.mxu0 0.0
    %374 = vmatpush2.msra.mxu0 0.0
    %375 = vmatprep.subr.mxu0 0.0
    %376 = vmatpush2.msra.mxu0 0.0
    %377 = vmatprep.subr.mxu0 0.0
    %378 = vmatpush2.msra.mxu0 0.0
    %379 = vmatprep.subr.mxu0 0.0
    %380 = vmatpush2.msra.mxu0 0.0
    %381 = vmatprep.mubr.f32.mxu0 0.0
    %382 = vmatmul.mubr.f32.gmra.mxu0 %v315
    %v383 = vpop.f32.mrf.mxu0
    %v384 = vadd.f32 %v311, %v383
    %v385 = vpop.f32.mrf.mxu0
    %386 = vdwg.mxu0
    %v387 = vadd.f32 %v123, %v384
    %389 = vrot.lane.b32.xlu0 %v387, 3
    %v390 = vpop.permute.xlu0 %389
    %vm392 = vcmask 23552
    %v393 = vsel %vm392, %v122, %v390
    %vm394 = vcmask 154624
    %395 = vst.msk [vmem:[#allocation2] sm:$0xff] %vm394, %v393
    // Predicated region
    $region42: #{tpu_custom_call.1} parent=1 // pred_check
      _
    $region43: #{tpu_custom_call.1} parent=1 // pred_check_branch
      %397 = sbr.rel (0) target = $region45
    $region44: #{tpu_custom_call.1} parent=1 // pred_region
      %s399 = ssub.s32 128, 128
      %400 = vsyncadd [#allocation3], %s399
      %s402 = sshll.u32 [#allocation2], 4
      %s403 = int_to_ptr.vmem [resolvable:$true] %s402
      %405 = dma.vmem_to_hbm [thread:$0]  %s403, 128, %s10, [#allocation3]
    $region45: #{tpu_custom_call.1} parent=1 // pred_fallthru
      _
    // Predicated region
    $region46: #{tpu_custom_call.1} parent=1 // pred_check
      _
    $region47: #{tpu_custom_call.1} parent=1 // pred_check_branch
      %407 = sbr.rel (0) target = $region49
    $region48: #{tpu_custom_call.1} parent=1 // pred_region
      %408 = dma.done [#allocation3], 128
    $region49: #{tpu_custom_call.1} parent=1 // pred_fallthru
      _
    %409 = vsyncpa [#allocation3], 1

</llo_original>
